<compile_context>
chip_gen: v5e
topology: v5e:2x2
jax: 0.10.0
libtpu: 0.0.40
codegen_flags: <defaults>
</compile_context>

<pallas_src>
import functools

import jax
import jax.numpy as jnp
from jax.experimental import pallas as pl
from jax.experimental.pallas import tpu as pltpu


_SQRT_HALF = 0.7071067811865476


def _erf(x):
    # Abramowitz & Stegun 7.1.26 erf approximation, |abs error| <= 1.5e-7.
    a1 = 0.254829592
    a2 = -0.284496736
    a3 = 1.421413741
    a4 = -1.453152027
    a5 = 1.061405429
    p = 0.3275911
    sign = jnp.where(x < 0.0, -1.0, 1.0)
    ax = jnp.abs(x)
    t = 1.0 / (1.0 + p * ax)
    poly = ((((a5 * t + a4) * t + a3) * t + a2) * t + a1) * t
    return sign * (1.0 - poly * jnp.exp(-ax * ax))


def _gelu(x):
    # Exact (erf-based) GELU == torch.nn.GELU() default.
    return 0.5 * x * (1.0 + _erf(x * _SQRT_HALF))


def _fifb_kernel(wt_ref, wb_ref, b_ref, erp_ref, cmp_ref,
                 ferp_ref, fcmp_ref, fcat_ref):
    """Fused FIFB forward for one batch element.

    All activations are (dim, P) slabs (P = H*W, lane-dense). Each 1x1 conv
    over a channel-concat becomes Wt @ a + Wb @ b + bias followed by GELU.
    """
    wt = wt_ref[...]           # (dim, dim): weight columns for the 1st concat half
    wb = wb_ref[...]           # (dim, dim): weight columns for the 2nd concat half
    bias = b_ref[...]          # (dim, 1), broadcasts over P
    erp = erp_ref[0]           # (dim, P)
    cmp_ = cmp_ref[0]          # (dim, P)

    dot = functools.partial(jnp.dot, preferred_element_type=jnp.float32)

    t_bot_cmp = dot(wb, cmp_)                               # reused twice
    f_cat = _gelu(dot(wt, erp) + t_bot_cmp + bias)          # conv_cat(cat(erp, cmp))
    t_top_cat = dot(wt, f_cat)                              # reused twice
    f_cmp = _gelu(t_top_cat + t_bot_cmp + bias)             # conv_cat(cat(cat, cmp))
    f_erp = _gelu(t_top_cat + dot(wb, erp) + bias)          # conv_cat(cat(cat, erp))

    fcat_ref[0] = f_cat
    fcmp_ref[0] = f_cmp
    ferp_ref[0] = f_erp


def fifb_forward(f_erp, f_cmp, w_cat, b_cat):
    """FIFB forward.

    f_erp, f_cmp : (B, dim, H, W) float32
    w_cat        : (dim, 2*dim)  -- 1x1 Conv2d weight (squeezed)
    b_cat        : (dim,)        -- 1x1 Conv2d bias
    Returns (f_erp_out, f_cmp_out, f_cat), each (B, dim, H, W).
    """
    B, C, H, W = f_erp.shape
    assert f_cmp.shape == f_erp.shape
    P = H * W

    erp2 = f_erp.reshape(B, C, P)
    cmp2 = f_cmp.reshape(B, C, P)
    w_top = w_cat[:, :C]              # acts on the first tensor of each concat
    w_bot = w_cat[:, C:]              # acts on the second tensor of each concat
    bias = b_cat.reshape(C, 1)

    slab = jax.ShapeDtypeStruct((B, C, P), jnp.float32)
    act_spec = pl.BlockSpec((1, C, P), lambda b: (b, 0, 0))

    out_erp, out_cmp, out_cat = pl.pallas_call(
        _fifb_kernel,
        out_shape=(slab, slab, slab),
        grid=(B,),
        in_specs=[
            pl.BlockSpec((C, C), lambda b: (0, 0)),     # w_top
            pl.BlockSpec((C, C), lambda b: (0, 0)),     # w_bot
            pl.BlockSpec((C, 1), lambda b: (0, 0)),     # bias
            act_spec,                                   # f_erp slab
            act_spec,                                   # f_cmp slab
        ],
        out_specs=(act_spec, act_spec, act_spec),
        compiler_params=pltpu.CompilerParams(
            dimension_semantics=("parallel",)),
    )(w_top, w_bot, bias, erp2, cmp2)

    return (out_erp.reshape(B, C, H, W),
            out_cmp.reshape(B, C, H, W),
            out_cat.reshape(B, C, H, W))


# ----------------------------------------------------------------------------
# Pure-JAX reference (mirrors the PyTorch module) for verification.
# ----------------------------------------------------------------------------
def fifb_reference(f_erp, f_cmp, w_cat, b_cat):
    def conv_cat(x):  # x: (B, 2*dim, H, W) -> (B, dim, H, W)
        y = jnp.einsum("oc,bchw->bohw", w_cat, x) + b_cat.reshape(1, -1, 1, 1)
        return jax.nn.gelu(y, approximate=False)

    f_cat = conv_cat(jnp.concatenate([f_erp, f_cmp], axis=1))
    f_cmp_o = conv_cat(jnp.concatenate([f_cat, f_cmp], axis=1))
    f_erp_o = conv_cat(jnp.concatenate([f_cat, f_erp], axis=1))
    return f_erp_o, f_cmp_o, f_cat


if __name__ == "__main__":
    # FIFB(dim=4) on small feature maps.
    B, dim, H, W = 2, 4, 16, 16
    key = jax.random.PRNGKey(0)
    k1, k2, k3, k4 = jax.random.split(key, 4)
    f_erp = jax.random.normal(k1, (B, dim, H, W), jnp.float32)
    f_cmp = jax.random.normal(k2, (B, dim, H, W), jnp.float32)
    w_cat = 0.2 * jax.random.normal(k3, (dim, 2 * dim), jnp.float32)
    b_cat = 0.2 * jax.random.normal(k4, (dim,), jnp.float32)

    out = jax.jit(fifb_forward)(f_erp, f_cmp, w_cat, b_cat)
    out = jax.block_until_ready(out)
    assert out[0].shape == (B, dim, H, W), out[0].shape
    assert out[1].shape == (B, dim, H, W), out[1].shape
    assert out[2].shape == (B, dim, H, W), out[2].shape

    ref = jax.block_until_ready(fifb_reference(f_erp, f_cmp, w_cat, b_cat))
    for o, r, name in zip(out, ref, ("f_erp", "f_cmp", "f_cat")):
        err = float(jnp.max(jnp.abs(o - r)))
        assert jnp.allclose(o, r, atol=1e-5, rtol=1e-5), (name, err)

    print("KERNEL_OK")
</pallas_src>

<mosaic_0001>
module attributes {stable_mosaic.version = 11 : i64} {
  func.func @_fifb_kernel(%arg0: i32, %arg1: memref<4x4xf32, #tpu.memory_space<vmem>>, %arg2: memref<4x4xf32, #tpu.memory_space<vmem>>, %arg3: memref<4x1xf32, #tpu.memory_space<vmem>>, %arg4: memref<1x4x256xf32, #tpu.memory_space<vmem>>, %arg5: memref<1x4x256xf32, #tpu.memory_space<vmem>>, %arg6: memref<1x4x256xf32, #tpu.memory_space<vmem>>, %arg7: memref<1x4x256xf32, #tpu.memory_space<vmem>>, %arg8: memref<1x4x256xf32, #tpu.memory_space<vmem>>) attributes {dimension_semantics = [#tpu.dimension_semantics<parallel>], iteration_bounds = array<i64: 2>, scalar_prefetch = 0 : i64, scratch_operands = 0 : i64, tpu.core_type = #tpu.core_type<tc>, window_params = [{pipeline_mode = #tpu.pipeline_mode<synchronous>, transform_indices = @transform_0, window_bounds = array<i64: 4, 4>}, {pipeline_mode = #tpu.pipeline_mode<synchronous>, transform_indices = @transform_1, window_bounds = array<i64: 4, 4>}, {pipeline_mode = #tpu.pipeline_mode<synchronous>, transform_indices = @transform_2, window_bounds = array<i64: 4, 1>}, {transform_indices = @transform_3, window_bounds = array<i64: 1, 4, 256>}, {transform_indices = @transform_4, window_bounds = array<i64: 1, 4, 256>}, {transform_indices = @transform_5, window_bounds = array<i64: 1, 4, 256>}, {transform_indices = @transform_6, window_bounds = array<i64: 1, 4, 256>}, {transform_indices = @transform_7, window_bounds = array<i64: 1, 4, 256>}]} {
    %c0 = arith.constant 0 : index
    %c0_0 = arith.constant 0 : index
    %0 = vector.load %arg1[%c0, %c0_0] : memref<4x4xf32, #tpu.memory_space<vmem>>, vector<4x4xf32>
    %c0_1 = arith.constant 0 : index
    %c0_2 = arith.constant 0 : index
    %1 = vector.load %arg2[%c0_1, %c0_2] : memref<4x4xf32, #tpu.memory_space<vmem>>, vector<4x4xf32>
    %c0_3 = arith.constant 0 : index
    %c0_4 = arith.constant 0 : index
    %2 = vector.load %arg3[%c0_3, %c0_4] : memref<4x1xf32, #tpu.memory_space<vmem>>, vector<4x1xf32>
    %c0_5 = arith.constant 0 : index
    %c0_6 = arith.constant 0 : index
    %c0_7 = arith.constant 0 : index
    %3 = vector.load %arg4[%c0_5, %c0_6, %c0_7] : memref<1x4x256xf32, #tpu.memory_space<vmem>>, vector<1x4x256xf32>
    %4 = vector.shape_cast %3 : vector<1x4x256xf32> to vector<4x256xf32>
    %c0_8 = arith.constant 0 : index
    %c0_9 = arith.constant 0 : index
    %c0_10 = arith.constant 0 : index
    %5 = vector.load %arg5[%c0_8, %c0_9, %c0_10] : memref<1x4x256xf32, #tpu.memory_space<vmem>>, vector<1x4x256xf32>
    %6 = vector.shape_cast %5 : vector<1x4x256xf32> to vector<4x256xf32>
    %cst = arith.constant dense<0.000000e+00> : vector<4x256xf32>
    %7 = tpu.matmul %1, %6, %cst {dimension_numbers = #tpu.dot_dimension_numbers<[1], [0], [0], [1], [0, 0, 1, 1], [], []>} : vector<4x4xf32>, vector<4x256xf32>, vector<4x256xf32> -> vector<4x256xf32>
    %cst_11 = arith.constant dense<0.000000e+00> : vector<4x256xf32>
    %8 = tpu.matmul %0, %4, %cst_11 {dimension_numbers = #tpu.dot_dimension_numbers<[1], [0], [0], [1], [0, 0, 1, 1], [], []>} : vector<4x4xf32>, vector<4x256xf32>, vector<4x256xf32> -> vector<4x256xf32>
    %9 = arith.addf %8, %7 : vector<4x256xf32>
    %10 = vector.broadcast %2 : vector<4x1xf32> to vector<4x256xf32>
    %11 = arith.addf %9, %10 : vector<4x256xf32>
    %cst_12 = arith.constant 5.000000e-01 : f32
    %12 = vector.broadcast %cst_12 : f32 to vector<4x256xf32>
    %13 = arith.mulf %12, %11 : vector<4x256xf32>
    %cst_13 = arith.constant 0.707106769 : f32
    %14 = vector.broadcast %cst_13 : f32 to vector<4x256xf32>
    %15 = arith.mulf %11, %14 : vector<4x256xf32>
    %cst_14 = arith.constant 0.000000e+00 : f32
    %16 = vector.broadcast %cst_14 : f32 to vector<4x256xf32>
    %17 = arith.cmpf olt, %15, %16 : vector<4x256xf32>
    %cst_15 = arith.constant -1.000000e+00 : f32
    %cst_16 = arith.constant 1.000000e+00 : f32
    %18 = vector.broadcast %cst_15 : f32 to vector<4x256xf32>
    %19 = vector.broadcast %cst_16 : f32 to vector<4x256xf32>
    %20 = arith.select %17, %18, %19 : vector<4x256xi1>, vector<4x256xf32>
    %21 = math.absf %15 : vector<4x256xf32>
    %cst_17 = arith.constant 0.327591091 : f32
    %22 = vector.broadcast %cst_17 : f32 to vector<4x256xf32>
    %23 = arith.mulf %22, %21 : vector<4x256xf32>
    %cst_18 = arith.constant 1.000000e+00 : f32
    %24 = vector.broadcast %cst_18 : f32 to vector<4x256xf32>
    %25 = arith.addf %24, %23 : vector<4x256xf32>
    %cst_19 = arith.constant 1.000000e+00 : f32
    %26 = vector.broadcast %cst_19 : f32 to vector<4x256xf32>
    %27 = arith.divf %26, %25 : vector<4x256xf32>
    %cst_20 = arith.constant 1.06140542 : f32
    %28 = vector.broadcast %cst_20 : f32 to vector<4x256xf32>
    %29 = arith.mulf %28, %27 : vector<4x256xf32>
    %cst_21 = arith.constant -1.45315206 : f32
    %30 = vector.broadcast %cst_21 : f32 to vector<4x256xf32>
    %31 = arith.addf %29, %30 : vector<4x256xf32>
    %32 = arith.mulf %31, %27 : vector<4x256xf32>
    %cst_22 = arith.constant 1.42141378 : f32
    %33 = vector.broadcast %cst_22 : f32 to vector<4x256xf32>
    %34 = arith.addf %32, %33 : vector<4x256xf32>
    %35 = arith.mulf %34, %27 : vector<4x256xf32>
    %cst_23 = arith.constant -0.284496725 : f32
    %36 = vector.broadcast %cst_23 : f32 to vector<4x256xf32>
    %37 = arith.addf %35, %36 : vector<4x256xf32>
    %38 = arith.mulf %37, %27 : vector<4x256xf32>
    %cst_24 = arith.constant 0.254829586 : f32
    %39 = vector.broadcast %cst_24 : f32 to vector<4x256xf32>
    %40 = arith.addf %38, %39 : vector<4x256xf32>
    %41 = arith.mulf %40, %27 : vector<4x256xf32>
    %cst_25 = arith.constant 0.000000e+00 : f32
    %42 = vector.broadcast %cst_25 : f32 to vector<4x256xf32>
    %43 = arith.subf %42, %21 : vector<4x256xf32>
    %44 = arith.mulf %43, %21 : vector<4x256xf32>
    %45 = math.exp %44 : vector<4x256xf32>
    %46 = arith.mulf %41, %45 : vector<4x256xf32>
    %cst_26 = arith.constant 1.000000e+00 : f32
    %47 = vector.broadcast %cst_26 : f32 to vector<4x256xf32>
    %48 = arith.subf %47, %46 : vector<4x256xf32>
    %49 = arith.mulf %20, %48 : vector<4x256xf32>
    %cst_27 = arith.constant 1.000000e+00 : f32
    %50 = vector.broadcast %cst_27 : f32 to vector<4x256xf32>
    %51 = arith.addf %50, %49 : vector<4x256xf32>
    %52 = arith.mulf %13, %51 : vector<4x256xf32>
    %cst_28 = arith.constant dense<0.000000e+00> : vector<4x256xf32>
    %53 = tpu.matmul %0, %52, %cst_28 {dimension_numbers = #tpu.dot_dimension_numbers<[1], [0], [0], [1], [0, 0, 1, 1], [], []>} : vector<4x4xf32>, vector<4x256xf32>, vector<4x256xf32> -> vector<4x256xf32>
    %54 = arith.addf %53, %7 : vector<4x256xf32>
    %55 = vector.broadcast %2 : vector<4x1xf32> to vector<4x256xf32>
    %56 = arith.addf %54, %55 : vector<4x256xf32>
    %cst_29 = arith.constant 5.000000e-01 : f32
    %57 = vector.broadcast %cst_29 : f32 to vector<4x256xf32>
    %58 = arith.mulf %57, %56 : vector<4x256xf32>
    %cst_30 = arith.constant 0.707106769 : f32
    %59 = vector.broadcast %cst_30 : f32 to vector<4x256xf32>
    %60 = arith.mulf %56, %59 : vector<4x256xf32>
    %cst_31 = arith.constant 0.000000e+00 : f32
    %61 = vector.broadcast %cst_31 : f32 to vector<4x256xf32>
    %62 = arith.cmpf olt, %60, %61 : vector<4x256xf32>
    %cst_32 = arith.constant -1.000000e+00 : f32
    %cst_33 = arith.constant 1.000000e+00 : f32
    %63 = vector.broadcast %cst_32 : f32 to vector<4x256xf32>
    %64 = vector.broadcast %cst_33 : f32 to vector<4x256xf32>
    %65 = arith.select %62, %63, %64 : vector<4x256xi1>, vector<4x256xf32>
    %66 = math.absf %60 : vector<4x256xf32>
    %cst_34 = arith.constant 0.327591091 : f32
    %67 = vector.broadcast %cst_34 : f32 to vector<4x256xf32>
    %68 = arith.mulf %67, %66 : vector<4x256xf32>
    %cst_35 = arith.constant 1.000000e+00 : f32
    %69 = vector.broadcast %cst_35 : f32 to vector<4x256xf32>
    %70 = arith.addf %69, %68 : vector<4x256xf32>
    %cst_36 = arith.constant 1.000000e+00 : f32
    %71 = vector.broadcast %cst_36 : f32 to vector<4x256xf32>
    %72 = arith.divf %71, %70 : vector<4x256xf32>
    %cst_37 = arith.constant 1.06140542 : f32
    %73 = vector.broadcast %cst_37 : f32 to vector<4x256xf32>
    %74 = arith.mulf %73, %72 : vector<4x256xf32>
    %cst_38 = arith.constant -1.45315206 : f32
    %75 = vector.broadcast %cst_38 : f32 to vector<4x256xf32>
    %76 = arith.addf %74, %75 : vector<4x256xf32>
    %77 = arith.mulf %76, %72 : vector<4x256xf32>
    %cst_39 = arith.constant 1.42141378 : f32
    %78 = vector.broadcast %cst_39 : f32 to vector<4x256xf32>
    %79 = arith.addf %77, %78 : vector<4x256xf32>
    %80 = arith.mulf %79, %72 : vector<4x256xf32>
    %cst_40 = arith.constant -0.284496725 : f32
    %81 = vector.broadcast %cst_40 : f32 to vector<4x256xf32>
    %82 = arith.addf %80, %81 : vector<4x256xf32>
    %83 = arith.mulf %82, %72 : vector<4x256xf32>
    %cst_41 = arith.constant 0.254829586 : f32
    %84 = vector.broadcast %cst_41 : f32 to vector<4x256xf32>
    %85 = arith.addf %83, %84 : vector<4x256xf32>
    %86 = arith.mulf %85, %72 : vector<4x256xf32>
    %cst_42 = arith.constant 0.000000e+00 : f32
    %87 = vector.broadcast %cst_42 : f32 to vector<4x256xf32>
    %88 = arith.subf %87, %66 : vector<4x256xf32>
    %89 = arith.mulf %88, %66 : vector<4x256xf32>
    %90 = math.exp %89 : vector<4x256xf32>
    %91 = arith.mulf %86, %90 : vector<4x256xf32>
    %cst_43 = arith.constant 1.000000e+00 : f32
    %92 = vector.broadcast %cst_43 : f32 to vector<4x256xf32>
    %93 = arith.subf %92, %91 : vector<4x256xf32>
    %94 = arith.mulf %65, %93 : vector<4x256xf32>
    %cst_44 = arith.constant 1.000000e+00 : f32
    %95 = vector.broadcast %cst_44 : f32 to vector<4x256xf32>
    %96 = arith.addf %95, %94 : vector<4x256xf32>
    %97 = arith.mulf %58, %96 : vector<4x256xf32>
    %cst_45 = arith.constant dense<0.000000e+00> : vector<4x256xf32>
    %98 = tpu.matmul %1, %4, %cst_45 {dimension_numbers = #tpu.dot_dimension_numbers<[1], [0], [0], [1], [0, 0, 1, 1], [], []>} : vector<4x4xf32>, vector<4x256xf32>, vector<4x256xf32> -> vector<4x256xf32>
    %99 = arith.addf %53, %98 : vector<4x256xf32>
    %100 = vector.broadcast %2 : vector<4x1xf32> to vector<4x256xf32>
    %101 = arith.addf %99, %100 : vector<4x256xf32>
    %cst_46 = arith.constant 5.000000e-01 : f32
    %102 = vector.broadcast %cst_46 : f32 to vector<4x256xf32>
    %103 = arith.mulf %102, %101 : vector<4x256xf32>
    %cst_47 = arith.constant 0.707106769 : f32
    %104 = vector.broadcast %cst_47 : f32 to vector<4x256xf32>
    %105 = arith.mulf %101, %104 : vector<4x256xf32>
    %cst_48 = arith.constant 0.000000e+00 : f32
    %106 = vector.broadcast %cst_48 : f32 to vector<4x256xf32>
    %107 = arith.cmpf olt, %105, %106 : vector<4x256xf32>
    %cst_49 = arith.constant -1.000000e+00 : f32
    %cst_50 = arith.constant 1.000000e+00 : f32
    %108 = vector.broadcast %cst_49 : f32 to vector<4x256xf32>
    %109 = vector.broadcast %cst_50 : f32 to vector<4x256xf32>
    %110 = arith.select %107, %108, %109 : vector<4x256xi1>, vector<4x256xf32>
    %111 = math.absf %105 : vector<4x256xf32>
    %cst_51 = arith.constant 0.327591091 : f32
    %112 = vector.broadcast %cst_51 : f32 to vector<4x256xf32>
    %113 = arith.mulf %112, %111 : vector<4x256xf32>
    %cst_52 = arith.constant 1.000000e+00 : f32
    %114 = vector.broadcast %cst_52 : f32 to vector<4x256xf32>
    %115 = arith.addf %114, %113 : vector<4x256xf32>
    %cst_53 = arith.constant 1.000000e+00 : f32
    %116 = vector.broadcast %cst_53 : f32 to vector<4x256xf32>
    %117 = arith.divf %116, %115 : vector<4x256xf32>
    %cst_54 = arith.constant 1.06140542 : f32
    %118 = vector.broadcast %cst_54 : f32 to vector<4x256xf32>
    %119 = arith.mulf %118, %117 : vector<4x256xf32>
    %cst_55 = arith.constant -1.45315206 : f32
    %120 = vector.broadcast %cst_55 : f32 to vector<4x256xf32>
    %121 = arith.addf %119, %120 : vector<4x256xf32>
    %122 = arith.mulf %121, %117 : vector<4x256xf32>
    %cst_56 = arith.constant 1.42141378 : f32
    %123 = vector.broadcast %cst_56 : f32 to vector<4x256xf32>
    %124 = arith.addf %122, %123 : vector<4x256xf32>
    %125 = arith.mulf %124, %117 : vector<4x256xf32>
    %cst_57 = arith.constant -0.284496725 : f32
    %126 = vector.broadcast %cst_57 : f32 to vector<4x256xf32>
    %127 = arith.addf %125, %126 : vector<4x256xf32>
    %128 = arith.mulf %127, %117 : vector<4x256xf32>
    %cst_58 = arith.constant 0.254829586 : f32
    %129 = vector.broadcast %cst_58 : f32 to vector<4x256xf32>
    %130 = arith.addf %128, %129 : vector<4x256xf32>
    %131 = arith.mulf %130, %117 : vector<4x256xf32>
    %cst_59 = arith.constant 0.000000e+00 : f32
    %132 = vector.broadcast %cst_59 : f32 to vector<4x256xf32>
    %133 = arith.subf %132, %111 : vector<4x256xf32>
    %134 = arith.mulf %133, %111 : vector<4x256xf32>
    %135 = math.exp %134 : vector<4x256xf32>
    %136 = arith.mulf %131, %135 : vector<4x256xf32>
    %cst_60 = arith.constant 1.000000e+00 : f32
    %137 = vector.broadcast %cst_60 : f32 to vector<4x256xf32>
    %138 = arith.subf %137, %136 : vector<4x256xf32>
    %139 = arith.mulf %110, %138 : vector<4x256xf32>
    %cst_61 = arith.constant 1.000000e+00 : f32
    %140 = vector.broadcast %cst_61 : f32 to vector<4x256xf32>
    %141 = arith.addf %140, %139 : vector<4x256xf32>
    %142 = arith.mulf %103, %141 : vector<4x256xf32>
    %c0_62 = arith.constant 0 : index
    %c0_63 = arith.constant 0 : index
    %c0_64 = arith.constant 0 : index
    %143 = vector.load %arg8[%c0_62, %c0_63, %c0_64] : memref<1x4x256xf32, #tpu.memory_space<vmem>>, vector<1x4x256xf32>
    %144 = vector.shape_cast %143 : vector<1x4x256xf32> to vector<4x256xf32>
    %145 = vector.shape_cast %52 : vector<4x256xf32> to vector<1x4x256xf32>
    tpu.vector_store %arg8[%c0_62, %c0_63, %c0_64], %145 {strides = array<i32>} : memref<1x4x256xf32, #tpu.memory_space<vmem>>, vector<1x4x256xf32>,
    %c0_65 = arith.constant 0 : index
    %c0_66 = arith.constant 0 : index
    %c0_67 = arith.constant 0 : index
    %146 = vector.load %arg7[%c0_65, %c0_66, %c0_67] : memref<1x4x256xf32, #tpu.memory_space<vmem>>, vector<1x4x256xf32>
    %147 = vector.shape_cast %146 : vector<1x4x256xf32> to vector<4x256xf32>
    %148 = vector.shape_cast %97 : vector<4x256xf32> to vector<1x4x256xf32>
    tpu.vector_store %arg7[%c0_65, %c0_66, %c0_67], %148 {strides = array<i32>} : memref<1x4x256xf32, #tpu.memory_space<vmem>>, vector<1x4x256xf32>,
    %c0_68 = arith.constant 0 : index
    %c0_69 = arith.constant 0 : index
    %c0_70 = arith.constant 0 : index
    %149 = vector.load %arg6[%c0_68, %c0_69, %c0_70] : memref<1x4x256xf32, #tpu.memory_space<vmem>>, vector<1x4x256xf32>
    %150 = vector.shape_cast %149 : vector<1x4x256xf32> to vector<4x256xf32>
    %151 = vector.shape_cast %142 : vector<4x256xf32> to vector<1x4x256xf32>
    tpu.vector_store %arg6[%c0_68, %c0_69, %c0_70], %151 {strides = array<i32>} : memref<1x4x256xf32, #tpu.memory_space<vmem>>, vector<1x4x256xf32>,
    return
  }
  func.func @transform_0(%arg0: i32) -> (i32, i32) {
    %c0_i32 = arith.constant 0 : i32
    %c0_i32_0 = arith.constant 0 : i32
    %c0_i32_1 = arith.constant 0 : i32
    return %c0_i32, %c0_i32_0 : i32, i32
  }
  func.func @transform_1(%arg0: i32) -> (i32, i32) {
    %c0_i32 = arith.constant 0 : i32
    %c0_i32_0 = arith.constant 0 : i32
    %c0_i32_1 = arith.constant 0 : i32
    return %c0_i32, %c0_i32_0 : i32, i32
  }
  func.func @transform_2(%arg0: i32) -> (i32, i32) {
    %c0_i32 = arith.constant 0 : i32
    %c0_i32_0 = arith.constant 0 : i32
    %c0_i32_1 = arith.constant 0 : i32
    return %c0_i32, %c0_i32_0 : i32, i32
  }
  func.func @transform_3(%arg0: i32) -> (i32, i32, i32) {
    %c0_i32 = arith.constant 0 : i32
    %c0_i32_0 = arith.constant 0 : i32
    %c0_i32_1 = arith.constant 0 : i32
    return %arg0, %c0_i32, %c0_i32_0 : i32, i32, i32
  }
  func.func @transform_4(%arg0: i32) -> (i32, i32, i32) {
    %c0_i32 = arith.constant 0 : i32
    %c0_i32_0 = arith.constant 0 : i32
    %c0_i32_1 = arith.constant 0 : i32
    return %arg0, %c0_i32, %c0_i32_0 : i32, i32, i32
  }
  func.func @transform_5(%arg0: i32) -> (i32, i32, i32) {
    %c0_i32 = arith.constant 0 : i32
    %c0_i32_0 = arith.constant 0 : i32
    %c0_i32_1 = arith.constant 0 : i32
    return %arg0, %c0_i32, %c0_i32_0 : i32, i32, i32
  }
  func.func @transform_6(%arg0: i32) -> (i32, i32, i32) {
    %c0_i32 = arith.constant 0 : i32
    %c0_i32_0 = arith.constant 0 : i32
    %c0_i32_1 = arith.constant 0 : i32
    return %arg0, %c0_i32, %c0_i32_0 : i32, i32, i32
  }
  func.func @transform_7(%arg0: i32) -> (i32, i32, i32) {
    %c0_i32 = arith.constant 0 : i32
    %c0_i32_0 = arith.constant 0 : i32
    %c0_i32_1 = arith.constant 0 : i32
    return %arg0, %c0_i32, %c0_i32_0 : i32, i32, i32
  }
}

</mosaic_0001>

<llo_original>
// kernel: fifb_forward.1
$region0: #{fifb_forward.1}
  #allocation0 [shape = 'u32[]', space=smem, size = 0x4, offset = 0x4, fixed_abs, tag = 'smem constant byte address 0x4 - core index']
  #allocation1 [shape = 'u32[72,128]{1,0:T(1,128)}', space=vmem, size = 0x9000, scoped, tag = 'internal scratch']
  %s0 = inlined_call_operand.vmem [shape: f32[4,4], index: 0, kind: input, shape index: {}]
  %s1 = inlined_call_operand.vmem [shape: f32[4,4], index: 1, kind: input, shape index: {}]
  %s2 = inlined_call_operand.vmem [shape: f32[4,1], index: 2, kind: input, shape index: {}]
  %s3 = inlined_call_operand.vmem [shape: f32[2,4,256], index: 3, kind: input, shape index: {}]
  %s4 = inlined_call_operand.vmem [shape: f32[2,4,256], index: 4, kind: input, shape index: {}]
  %s5 = inlined_call_operand.vmem [shape: f32[2,4,256], index: 5, kind: output, shape index: {0}]
  %s6 = inlined_call_operand.vmem [shape: f32[2,4,256], index: 6, kind: output, shape index: {1}]
  %s7 = inlined_call_operand.vmem [shape: f32[2,4,256], index: 7, kind: output, shape index: {2}]
  %8 = xla_tuple %s5, %s6, %s7
  %s9 = sld [smem:[#allocation0]]
  $region69: #{fifb_forward.1} parent=0
    _
  %s11 = ssub.s32 1, %s9
  %s12 = scalar_select 0, %s11, %s9
  loop: start=0, step=1, limit=4
  $region2: #{fifb_forward.1} parent=0 // loop_pre_header
    _
  $region3: #{fifb_forward.1} parent=0 // loop_header
    %s14 = sphi 0, %s18
    %p15 = scmp.ge.s32.totalorder %s14, 4
    %s22 = sphi 0, %s22
    %s24 = sphi 0, %s22
    %s25 = sphi 0, %s24
    %s39 = sphi 0, %s25
    %s43 = sphi 0, %s43
    %s45 = sphi 0, %s43
    %s46 = sphi 0, %s45
    %s60 = sphi 0, %s46
    %s64 = sphi 0, %s64
    %s66 = sphi 0, %s64
    %s67 = sphi 0, %s66
    %s81 = sphi 0, %s67
    %s87 = sphi 0, %s89
    %s90 = sphi 0, %s87
    %s91 = sphi 0, %s90
    %s107 = sphi 0, %s91
    %s113 = sphi 0, %s115
    %s116 = sphi 0, %s113
    %s117 = sphi 0, %s116
    %s133 = sphi 0, %s117
    %s139 = sphi 0, %s141
    %s142 = sphi 0, %s139
    %s143 = sphi 0, %s142
    %s159 = sphi 0, %s143
    %s165 = sphi 0, %s167
    %s168 = sphi 0, %s165
    %s169 = sphi 0, %s168
    %s185 = sphi 0, %s169
    %s191 = sphi 0, %s193
    %s194 = sphi 0, %s191
    %s195 = sphi 0, %s194
    %s211 = sphi 0, %s195
  $region4: #{fifb_forward.1} parent=0 // loop_header_branch
    %17 = sbr.rel (%p15) target = $region8
  $region5: #{fifb_forward.1} parent=0 // loop_body
    %s19 = ssub.s32 %s14, 1
    %s20 = ssub.s32 %s14, 2
    %s21 = sadd.s32 %s14, 1
    %s23 = sadd.s32 %s22, 1
    %p26 = scmp.eq.s32.totalorder %s14, 1
    %p27 = scmp.ne.s32.totalorder %s22, %s24
    %p28 = scmp.eq.s32.totalorder %s14, 0
    %p29 = por %p27, %p28
    %p30 = scmp.ne.s32.totalorder %s22, %s24
    %p31 = scmp.eq.s32.totalorder %s19, 1
    %p32 = por %p30, %p31
    %p33 = scmp.ne.s32.totalorder %s24, %s25
    %p34 = scmp.eq.s32.totalorder %s19, 0
    %p35 = por %p33, %p34
    %p36 = scmp.ne.s32.totalorder %s24, %s25
    %p37 = scmp.eq.s32.totalorder %s20, 1
    %p38 = por %p36, %p37
    %p40 = scmp.ne.s32.totalorder %s25, %s39
    %p41 = scmp.eq.s32.totalorder %s20, 0
    %p42 = por %p40, %p41
    %s44 = sadd.s32 %s43, 1
    %p47 = scmp.eq.s32.totalorder %s14, 1
    %p48 = scmp.ne.s32.totalorder %s43, %s45
    %p49 = scmp.eq.s32.totalorder %s14, 0
    %p50 = por %p48, %p49
    %p51 = scmp.ne.s32.totalorder %s43, %s45
    %p52 = scmp.eq.s32.totalorder %s19, 1
    %p53 = por %p51, %p52
    %p54 = scmp.ne.s32.totalorder %s45, %s46
    %p55 = scmp.eq.s32.totalorder %s19, 0
    %p56 = por %p54, %p55
    %p57 = scmp.ne.s32.totalorder %s45, %s46
    %p58 = scmp.eq.s32.totalorder %s20, 1
    %p59 = por %p57, %p58
    %p61 = scmp.ne.s32.totalorder %s46, %s60
    %p62 = scmp.eq.s32.totalorder %s20, 0
    %p63 = por %p61, %p62
    %s65 = sadd.s32 %s64, 1
    %p68 = scmp.eq.s32.totalorder %s14, 1
    %p69 = scmp.ne.s32.totalorder %s64, %s66
    %p70 = scmp.eq.s32.totalorder %s14, 0
    %p71 = por %p69, %p70
    %p72 = scmp.ne.s32.totalorder %s64, %s66
    %p73 = scmp.eq.s32.totalorder %s19, 1
    %p74 = por %p72, %p73
    %p75 = scmp.ne.s32.totalorder %s66, %s67
    %p76 = scmp.eq.s32.totalorder %s19, 0
    %p77 = por %p75, %p76
    %p78 = scmp.ne.s32.totalorder %s66, %s67
    %p79 = scmp.eq.s32.totalorder %s20, 1
    %p80 = por %p78, %p79
    %p82 = scmp.ne.s32.totalorder %s67, %s81
    %p83 = scmp.eq.s32.totalorder %s20, 0
    %p84 = por %p82, %p83
    %s85 = ssub.s32 %s14, %s21
    %p86 = scmp.eq.s32.totalorder %s85, 0
    %s88 = sadd.s32 %s87, 1
    %s89 = scalar_select %p86, %s87, %s88
    %p92 = pneg %p86
    %p93 = scmp.eq.s32.totalorder %s14, 1
    %p94 = por %p92, %p93
    %p95 = scmp.ne.s32.totalorder %s87, %s90
    %p96 = scmp.eq.s32.totalorder %s14, 0
    %p97 = por %p95, %p96
    %p98 = scmp.ne.s32.totalorder %s87, %s90
    %p99 = scmp.eq.s32.totalorder %s19, 1
    %p100 = por %p98, %p99
    %p101 = scmp.ne.s32.totalorder %s90, %s91
    %p102 = scmp.eq.s32.totalorder %s19, 0
    %p103 = por %p101, %p102
    %p104 = scmp.ne.s32.totalorder %s90, %s91
    %p105 = scmp.eq.s32.totalorder %s20, 1
    %p106 = por %p104, %p105
    %p108 = scmp.ne.s32.totalorder %s91, %s107
    %p109 = scmp.eq.s32.totalorder %s20, 0
    %p110 = por %p108, %p109
    %s111 = ssub.s32 %s14, %s21
    %p112 = scmp.eq.s32.totalorder %s111, 0
    %s114 = sadd.s32 %s113, 1
    %s115 = scalar_select %p112, %s113, %s114
    %p118 = pneg %p112
    %p119 = scmp.eq.s32.totalorder %s14, 1
    %p120 = por %p118, %p119
    %p121 = scmp.ne.s32.totalorder %s113, %s116
    %p122 = scmp.eq.s32.totalorder %s14, 0
    %p123 = por %p121, %p122
    %p124 = scmp.ne.s32.totalorder %s113, %s116
    %p125 = scmp.eq.s32.totalorder %s19, 1
    %p126 = por %p124, %p125
    %p127 = scmp.ne.s32.totalorder %s116, %s117
    %p128 = scmp.eq.s32.totalorder %s19, 0
    %p129 = por %p127, %p128
    %p130 = scmp.ne.s32.totalorder %s116, %s117
    %p131 = scmp.eq.s32.totalorder %s20, 1
    %p132 = por %p130, %p131
    %p134 = scmp.ne.s32.totalorder %s117, %s133
    %p135 = scmp.eq.s32.totalorder %s20, 0
    %p136 = por %p134, %p135
    %s137 = ssub.s32 %s14, %s21
    %p138 = scmp.eq.s32.totalorder %s137, 0
    %s140 = sadd.s32 %s139, 1
    %s141 = scalar_select %p138, %s139, %s140
    %p144 = pneg %p138
    %p145 = scmp.eq.s32.totalorder %s14, 1
    %p146 = por %p144, %p145
    %p147 = scmp.ne.s32.totalorder %s139, %s142
    %p148 = scmp.eq.s32.totalorder %s14, 0
    %p149 = por %p147, %p148
    %p150 = scmp.ne.s32.totalorder %s139, %s142
    %p151 = scmp.eq.s32.totalorder %s19, 1
    %p152 = por %p150, %p151
    %p153 = scmp.ne.s32.totalorder %s142, %s143
    %p154 = scmp.eq.s32.totalorder %s19, 0
    %p155 = por %p153, %p154
    %p156 = scmp.ne.s32.totalorder %s142, %s143
    %p157 = scmp.eq.s32.totalorder %s20, 1
    %p158 = por %p156, %p157
    %p160 = scmp.ne.s32.totalorder %s143, %s159
    %p161 = scmp.eq.s32.totalorder %s20, 0
    %p162 = por %p160, %p161
    %s163 = ssub.s32 %s14, %s21
    %p164 = scmp.eq.s32.totalorder %s163, 0
    %s166 = sadd.s32 %s165, 1
    %s167 = scalar_select %p164, %s165, %s166
    %p170 = pneg %p164
    %p171 = scmp.eq.s32.totalorder %s14, 1
    %p172 = por %p170, %p171
    %p173 = scmp.ne.s32.totalorder %s165, %s168
    %p174 = scmp.eq.s32.totalorder %s14, 0
    %p175 = por %p173, %p174
    %p176 = scmp.ne.s32.totalorder %s165, %s168
    %p177 = scmp.eq.s32.totalorder %s19, 1
    %p178 = por %p176, %p177
    %p179 = scmp.ne.s32.totalorder %s168, %s169
    %p180 = scmp.eq.s32.totalorder %s19, 0
    %p181 = por %p179, %p180
    %p182 = scmp.ne.s32.totalorder %s168, %s169
    %p183 = scmp.eq.s32.totalorder %s20, 1
    %p184 = por %p182, %p183
    %p186 = scmp.ne.s32.totalorder %s169, %s185
    %p187 = scmp.eq.s32.totalorder %s20, 0
    %p188 = por %p186, %p187
    %s189 = ssub.s32 %s14, %s21
    %p190 = scmp.eq.s32.totalorder %s189, 0
    %s192 = sadd.s32 %s191, 1
    %s193 = scalar_select %p190, %s191, %s192
    %p196 = pneg %p190
    %p197 = scmp.eq.s32.totalorder %s14, 1
    %p198 = por %p196, %p197
    %p199 = scmp.ne.s32.totalorder %s191, %s194
    %p200 = scmp.eq.s32.totalorder %s14, 0
    %p201 = por %p199, %p200
    %p202 = scmp.ne.s32.totalorder %s191, %s194
    %p203 = scmp.eq.s32.totalorder %s19, 1
    %p204 = por %p202, %p203
    %p205 = scmp.ne.s32.totalorder %s194, %s195
    %p206 = scmp.eq.s32.totalorder %s19, 0
    %p207 = por %p205, %p206
    %p208 = scmp.ne.s32.totalorder %s194, %s195
    %p209 = scmp.eq.s32.totalorder %s20, 1
    %p210 = por %p208, %p209
    %p212 = scmp.ne.s32.totalorder %s195, %s211
    %p213 = scmp.eq.s32.totalorder %s20, 0
    %p214 = por %p212, %p213
    %p215 = scmp.le.s32.totalorder 1, %s14
    %p216 = scmp.lt.s32.totalorder %s14, 3
    %p217 = pnand %p215, %p216
    %p218 = pneg %p217
    // Predicated region
    $region9: #{fifb_forward.1} parent=5 // pred_check
      _
    $region10: #{fifb_forward.1} parent=5 // pred_check_branch
      %220 = sbr.rel (%p217) target = $region12
    $region11: #{fifb_forward.1} parent=5 // pred_region
      %s221 = ssub.s32 %s14, 1
      // Predicated region
      $region13: #{fifb_forward.1} parent=11 // pred_check
        %p222 = pneg %p35
      $region14: #{fifb_forward.1} parent=11 // pred_check_branch
        %224 = sbr.rel (%p222) target = $region16
      $region15: #{fifb_forward.1} parent=11 // pred_region
        _
      $region16: #{fifb_forward.1} parent=11 // pred_fallthru
        _
      // Predicated region
      $region17: #{fifb_forward.1} parent=11 // pred_check
        %p225 = pneg %p56
      $region18: #{fifb_forward.1} parent=11 // pred_check_branch
        %227 = sbr.rel (%p225) target = $region20
      $region19: #{fifb_forward.1} parent=11 // pred_region
        _
      $region20: #{fifb_forward.1} parent=11 // pred_fallthru
        _
      // Predicated region
      $region21: #{fifb_forward.1} parent=11 // pred_check
        %p228 = pneg %p77
      $region22: #{fifb_forward.1} parent=11 // pred_check_branch
        %230 = sbr.rel (%p228) target = $region24
      $region23: #{fifb_forward.1} parent=11 // pred_region
        _
      $region24: #{fifb_forward.1} parent=11 // pred_fallthru
        _
    $region12: #{fifb_forward.1} parent=5 // pred_fallthru
      _
    %p231 = scmp.lt.s32.totalorder %s14, 2
    // Predicated region
    $region25: #{fifb_forward.1} parent=5 // pred_check
      %p232 = pneg %p231
    $region26: #{fifb_forward.1} parent=5 // pred_check_branch
      %234 = sbr.rel (%p232) target = $region28
    $region27: #{fifb_forward.1} parent=5 // pred_region
      // Predicated region
      $region29: #{fifb_forward.1} parent=27 // pred_check
        %p235 = pneg %p97
      $region30: #{fifb_forward.1} parent=27 // pred_check_branch
        %237 = sbr.rel (%p235) target = $region32
      $region31: #{fifb_forward.1} parent=27 // pred_region
        %p238 = scmp.lt.s32.totalorder %s14, 1
        %s239 = scalar_select %p238, %s14, 1
        %s240 = smul.addr %s239, 2
        %s241 = smul.addr %s240, 4
        %s242 = scalar_lea.vmem %s3, %s241
      $region32: #{fifb_forward.1} parent=27 // pred_fallthru
        _
      // Predicated region
      $region33: #{fifb_forward.1} parent=27 // pred_check
        %p243 = pneg %p123
      $region34: #{fifb_forward.1} parent=27 // pred_check_branch
        %245 = sbr.rel (%p243) target = $region36
      $region35: #{fifb_forward.1} parent=27 // pred_region
        %p246 = scmp.lt.s32.totalorder %s14, 1
        %s247 = scalar_select %p246, %s14, 1
        %s248 = smul.addr %s247, 2
        %s249 = smul.addr %s248, 4
        %s250 = scalar_lea.vmem %s4, %s249
      $region36: #{fifb_forward.1} parent=27 // pred_fallthru
        _
    $region28: #{fifb_forward.1} parent=5 // pred_fallthru
      _
    %p251 = scmp.le.s32.totalorder 1, %s14
    %p252 = scmp.lt.s32.totalorder %s14, 3
    %p253 = pnand %p251, %p252
    %p254 = pneg %p253
    // Predicated region
    $region37: #{fifb_forward.1} parent=5 // pred_check
      _
    $region38: #{fifb_forward.1} parent=5 // pred_check_branch
      %256 = sbr.rel (%p253) target = $region40
    $region39: #{fifb_forward.1} parent=5 // pred_region
      %s257 = ssub.s32 %s14, 1
      %p258 = pneg %p35
      %p259 = pneg %p32
      %p260 = pneg %p56
      %p261 = pneg %p53
      %p262 = pneg %p77
      %p263 = pneg %p74
      %p264 = scmp.lt.s32.totalorder %s19, 1
      %s265 = scalar_select %p264, %s19, 1
      %s266 = smul.addr %s265, 2
      %s267 = smul.addr %s266, 4
      %s268 = scalar_lea.vmem %s3, %s267
      %p269 = pneg %p103
      %p270 = pneg %p100
      %p271 = scmp.lt.s32.totalorder %s19, 1
      %s272 = scalar_select %p271, %s19, 1
      %s273 = smul.addr %s272, 2
      %s274 = smul.addr %s273, 4
      %s275 = scalar_lea.vmem %s4, %s274
      %p276 = pneg %p129
      %p277 = pneg %p126
      %p278 = pneg %p155
      %p279 = pneg %p152
      %p280 = scmp.lt.s32.totalorder %s19, 1
      %s281 = scalar_select %p280, %s19, 1
      %s282 = smul.addr %s281, 2
      %s283 = smul.addr %s282, 4
      %s284 = scalar_lea.vmem %s5, %s283
      %p285 = pneg %p181
      %p286 = pneg %p178
      %p287 = scmp.lt.s32.totalorder %s19, 1
      %s288 = scalar_select %p287, %s19, 1
      %s289 = smul.addr %s288, 2
      %s290 = smul.addr %s289, 4
      %s291 = scalar_lea.vmem %s6, %s290
      %p292 = pneg %p207
      %p293 = pneg %p204
      %p294 = scmp.lt.s32.totalorder %s19, 1
      %s295 = scalar_select %p294, %s19, 1
      %s296 = smul.addr %s295, 2
      %s297 = smul.addr %s296, 4
      %s298 = scalar_lea.vmem %s7, %s297
      %p299 = scmp.lt.s32.totalorder %s19, 1
      %s300 = scalar_select %p299, %s19, 1
      %s301 = smul.addr %s300, 2
      %s302 = smul.addr %s301, 4
      %s303 = scalar_lea.vmem %s3, %s302
      %p304 = scmp.lt.s32.totalorder %s19, 1
      %s305 = scalar_select %p304, %s19, 1
      %s306 = smul.addr %s305, 2
      %s307 = smul.addr %s306, 4
      %s308 = scalar_lea.vmem %s4, %s307
      %p309 = scmp.lt.s32.totalorder %s19, 1
      %s310 = scalar_select %p309, %s19, 1
      %s311 = smul.addr %s310, 2
      %s312 = smul.addr %s311, 4
      %s313 = scalar_lea.vmem %s5, %s312
      %p314 = scmp.lt.s32.totalorder %s19, 1
      %s315 = scalar_select %p314, %s19, 1
      %s316 = smul.addr %s315, 2
      %s317 = smul.addr %s316, 4
      %s318 = scalar_lea.vmem %s6, %s317
      %p319 = scmp.lt.s32.totalorder %s19, 1
      %s320 = scalar_select %p319, %s19, 1
      %s321 = smul.addr %s320, 2
      %s322 = smul.addr %s321, 4
      %s323 = scalar_lea.vmem %s7, %s322
      %v324 = vld [vmem:[%s0] sm:$0xf]
      %v325 = vld [vmem:[%s1] sm:$0xf]
      %v326 = vld [vmem:[%s2] sm:$0xf]
      %v327 = vld [vmem:[%s303] sm:$0xff]
      %v328 = vld [vmem:[%s308] sm:$0xff]
      %330 = vst [vmem:[#allocation1] ss:$2 sm:$0xff] %v328
      %v331 = vld.sshfl [vmem:[#allocation1] sm:$0xff pattern:$0x75316420]
      %v332 = vld.sshfl [vmem:[#allocation1 + $0x8] sm:$0xff pattern:$0x75316420]
      %vm333 = vcmask 31744
      %v335 = vsel %vm333, %v325, 0
      %vm337 = vcmask 1043456
      %v338 = vsel %vm337, %v331, 0
      %v340 = vsel %vm337, %v332, 0
      %342 = vmatpush.msra.mxu0 0.0
      %343 = vmatpush.msra.mxu0 0.0
      %344 = vmatpush.msra.mxu0 0.0
      %345 = vmatpush.msra.mxu0 0.0
      %346 = vmatpush.msra.mxu0 0.0
      %347 = vmatpush.msra.mxu0 0.0
      %348 = vmatpush.msra.mxu0 0.0
      %349 = vmatpush.msra.mxu0 0.0
      %350 = vmatpush.msra.mxu0 0.0
      %351 = vmatpush.msra.mxu0 0.0
      %352 = vmatpush.msra.mxu0 0.0
      %353 = vmatpush.msra.mxu0 0.0
      %354 = vmatpush.msra.mxu0 0.0
      %355 = vmatpush.msra.mxu0 0.0
      %356 = vmatpush.msra.mxu0 0.0
      %357 = vmatpush.msra.mxu0 %v338
      %358 = vmatmul.f32.gmra.mxu0 %v335
      %v359 = vpop.f32.mrf.mxu0
      %v360 = vadd.f32 0.0, %v359
      %361 = vdwg.mxu0
      %362 = vmatpush.msra.mxu0 0.0
      %363 = vmatpush.msra.mxu0 0.0
      %364 = vmatpush.msra.mxu0 0.0
      %365 = vmatpush.msra.mxu0 0.0
      %366 = vmatpush.msra.mxu0 0.0
      %367 = vmatpush.msra.mxu0 0.0
      %368 = vmatpush.msra.mxu0 0.0
      %369 = vmatpush.msra.mxu0 0.0
      %370 = vmatpush.msra.mxu0 0.0
      %371 = vmatpush.msra.mxu0 0.0
      %372 = vmatpush.msra.mxu0 0.0
      %373 = vmatpush.msra.mxu0 0.0
      %374 = vmatpush.msra.mxu0 0.0
      %375 = vmatpush.msra.mxu0 0.0
      %376 = vmatpush.msra.mxu0 0.0
      %377 = vmatpush.msra.mxu0 %v340
      %378 = vmatmul.f32.gmra.mxu0 %v335
      %v379 = vpop.f32.mrf.mxu0
      %v380 = vadd.f32 0.0, %v379
      %381 = vdwg.mxu0
      %383 = vst [vmem:[#allocation1] ss:$2 sm:$0xff] %v327
      %v384 = vld.sshfl [vmem:[#allocation1] sm:$0xff pattern:$0x75316420]
      %v385 = vld.sshfl [vmem:[#allocation1 + $0x8] sm:$0xff pattern:$0x75316420]
      %v387 = vsel %vm333, %v324, 0
      %v389 = vsel %vm337, %v384, 0
      %v391 = vsel %vm337, %v385, 0
      %393 = vmatpush.msra.mxu0 0.0
      %394 = vmatpush.msra.mxu0 0.0
      %395 = vmatpush.msra.mxu0 0.0
      %396 = vmatpush.msra.mxu0 0.0
      %397 = vmatpush.msra.mxu0 0.0
      %398 = vmatpush.msra.mxu0 0.0
      %399 = vmatpush.msra.mxu0 0.0
      %400 = vmatpush.msra.mxu0 0.0
      %401 = vmatpush.msra.mxu0 0.0
      %402 = vmatpush.msra.mxu0 0.0
      %403 = vmatpush.msra.mxu0 0.0
      %404 = vmatpush.msra.mxu0 0.0
      %405 = vmatpush.msra.mxu0 0.0
      %406 = vmatpush.msra.mxu0 0.0
      %407 = vmatpush.msra.mxu0 0.0
      %408 = vmatpush.msra.mxu0 %v389
      %409 = vmatmul.f32.gmra.mxu0 %v387
      %v410 = vpop.f32.mrf.mxu0
      %v411 = vadd.f32 %v360, %v410
      %412 = vdwg.mxu0
      %413 = vmatpush.msra.mxu0 0.0
      %414 = vmatpush.msra.mxu0 0.0
      %415 = vmatpush.msra.mxu0 0.0
      %416 = vmatpush.msra.mxu0 0.0
      %417 = vmatpush.msra.mxu0 0.0
      %418 = vmatpush.msra.mxu0 0.0
      %419 = vmatpush.msra.mxu0 0.0
      %420 = vmatpush.msra.mxu0 0.0
      %421 = vmatpush.msra.mxu0 0.0
      %422 = vmatpush.msra.mxu0 0.0
      %423 = vmatpush.msra.mxu0 0.0
      %424 = vmatpush.msra.mxu0 0.0
      %425 = vmatpush.msra.mxu0 0.0
      %426 = vmatpush.msra.mxu0 0.0
      %427 = vmatpush.msra.mxu0 0.0
      %428 = vmatpush.msra.mxu0 %v391
      %429 = vmatmul.f32.gmra.mxu0 %v387
      %v430 = vpop.f32.mrf.mxu0
      %v431 = vadd.f32 %v380, %v430
      %432 = vdwg.mxu0
      %434 = vset.pattern.permute.xlu0 0
      %435 = vperm.xlu0 %434, %v326
      %v436 = vpop.permute.xlu0 %435
      %v438 = vadd.f32 %v411, %v436
      %v439 = vadd.f32 %v431, %v436
      %v440 = vmul.f32 %v438, 0.5
      %v441 = vmul.f32 %v439, 0.5
      %v442 = vmul.f32 %v438, 0.70710677
      %v443 = vmul.f32 %v439, 0.70710677
      %vm444 = vcmp.lt.f32.partialorder %v442, 0.0
      %vm445 = vcmp.lt.f32.partialorder %v443, 0.0
      %v446 = vsel %vm444, -1.0, 1.0
      %v447 = vsel %vm445, -1.0, 1.0
      %v448 = vand.u32 2147483647, %v442
      %v449 = vand.u32 2147483647, %v443
      %v450 = vmul.f32 %v448, 0.3275911
      %v451 = vmul.f32 %v449, 0.3275911
      %v452 = vadd.f32 %v450, 1.0
      %v453 = vadd.f32 %v451, 1.0
      %v454 = vrcp.pop %v452
      %v455 = vmul.f32 %v452, %v454
      %v456 = vsub.f32 1.0, %v455
      %v457 = vmul.f32 %v454, %v456
      %v458 = vadd.f32 %v454, %v457
      %vm459 = vweird.f32 %v452
      %vm460 = vweird.f32 %v454
      %vm461 = vmor %vm459, %vm460
      %v462 = vsel %vm461, %v454, %v458
      %v463 = vand.u32 2147483647, %v452
      %vm464 = vcmp.eq.f32.partialorder %v463, 8.507059e+37
      %v465 = vand.u32 %v452, 2147483648
      %v466 = vor.u32 1.1754944e-38, %v465
      %v467 = vsel %vm464, %v466, %v462
      %v468 = vmul.f32 1.0, %v467
      %v469 = vrcp.pop %v453
      %v470 = vmul.f32 %v453, %v469
      %v471 = vsub.f32 1.0, %v470
      %v472 = vmul.f32 %v469, %v471
      %v473 = vadd.f32 %v469, %v472
      %vm474 = vweird.f32 %v453
      %vm475 = vweird.f32 %v469
      %vm476 = vmor %vm474, %vm475
      %v477 = vsel %vm476, %v469, %v473
      %v478 = vand.u32 2147483647, %v453
      %vm479 = vcmp.eq.f32.partialorder %v478, 8.507059e+37
      %v480 = vand.u32 %v453, 2147483648
      %v481 = vor.u32 1.1754944e-38, %v480
      %v482 = vsel %vm479, %v481, %v477
      %v483 = vmul.f32 1.0, %v482
      %v484 = vmul.f32 %v468, 1.0614054
      %v485 = vmul.f32 %v483, 1.0614054
      %v486 = vadd.f32 %v484, -1.4531521
      %v487 = vadd.f32 %v485, -1.4531521
      %v488 = vmul.f32 %v486, %v468
      %v489 = vmul.f32 %v487, %v483
      %v490 = vadd.f32 %v488, 1.4214138
      %v491 = vadd.f32 %v489, 1.4214138
      %v492 = vmul.f32 %v490, %v468
      %v493 = vmul.f32 %v491, %v483
      %v494 = vadd.f32 %v492, -0.28449672
      %v495 = vadd.f32 %v493, -0.28449672
      %v496 = vmul.f32 %v494, %v468
      %v497 = vmul.f32 %v495, %v483
      %v498 = vadd.f32 %v496, 0.2548296
      %v499 = vadd.f32 %v497, 0.2548296
      %v500 = vmul.f32 %v498, %v468
      %v501 = vmul.f32 %v499, %v483
      %v502 = vsub.f32 0.0, %v448
      %v503 = vsub.f32 0.0, %v449
      %v504 = vmul.f32 %v502, %v448
      %v505 = vmul.f32 %v503, %v449
      %v506 = vmul.f32 %v504, 1.442695
      %v507 = vpow.pop %v506
      %v508 = vmul.f32 %v505, 1.442695
      %v509 = vpow.pop %v508
      %v510 = vmul.f32 %v500, %v507
      %v511 = vmul.f32 %v501, %v509
      %v512 = vsub.f32 1.0, %v510
      %v513 = vsub.f32 1.0, %v511
      %v514 = vmul.f32 %v446, %v512
      %v515 = vmul.f32 %v447, %v513
      %v516 = vadd.f32 %v514, 1.0
      %v517 = vadd.f32 %v515, 1.0
      %v518 = vmul.f32 %v440, %v516
      %v519 = vmul.f32 %v441, %v517
      %v521 = vsel %vm337, %v518, 0
      %v524 = vsel %vm337, %v519, 0
      %526 = vmatpush.msra.mxu0 0.0
      %527 = vmatpush.msra.mxu0 0.0
      %528 = vmatpush.msra.mxu0 0.0
      %529 = vmatpush.msra.mxu0 0.0
      %530 = vmatpush.msra.mxu0 0.0
      %531 = vmatpush.msra.mxu0 0.0
      %532 = vmatpush.msra.mxu0 0.0
      %533 = vmatpush.msra.mxu0 0.0
      %534 = vmatpush.msra.mxu0 0.0
      %535 = vmatpush.msra.mxu0 0.0
      %536 = vmatpush.msra.mxu0 0.0
      %537 = vmatpush.msra.mxu0 0.0
      %538 = vmatpush.msra.mxu0 0.0
      %539 = vmatpush.msra.mxu0 0.0
      %540 = vmatpush.msra.mxu0 0.0
      %541 = vmatpush.msra.mxu0 %v521
      %542 = vmatmul.f32.gmra.mxu0 %v387
      %v543 = vpop.f32.mrf.mxu0
      %v544 = vadd.f32 0.0, %v543
      %545 = vdwg.mxu0
      %546 = vmatpush.msra.mxu0 0.0
      %547 = vmatpush.msra.mxu0 0.0
      %548 = vmatpush.msra.mxu0 0.0
      %549 = vmatpush.msra.mxu0 0.0
      %550 = vmatpush.msra.mxu0 0.0
      %551 = vmatpush.msra.mxu0 0.0
      %552 = vmatpush.msra.mxu0 0.0
      %553 = vmatpush.msra.mxu0 0.0
      %554 = vmatpush.msra.mxu0 0.0
      %555 = vmatpush.msra.mxu0 0.0
      %556 = vmatpush.msra.mxu0 0.0
      %557 = vmatpush.msra.mxu0 0.0
      %558 = vmatpush.msra.mxu0 0.0
      %559 = vmatpush.msra.mxu0 0.0
      %560 = vmatpush.msra.mxu0 0.0
      %561 = vmatpush.msra.mxu0 %v524
      %562 = vmatmul.f32.gmra.mxu0 %v387
      %v563 = vpop.f32.mrf.mxu0
      %v564 = vadd.f32 0.0, %v563
      %565 = vdwg.mxu0
      %v566 = vadd.f32 %v544, %v360
      %v567 = vadd.f32 %v564, %v380
      %v568 = vadd.f32 %v566, %v436
      %v569 = vadd.f32 %v567, %v436
      %v570 = vmul.f32 %v568, 0.5
      %v571 = vmul.f32 %v569, 0.5
      %v572 = vmul.f32 %v568, 0.70710677
      %v573 = vmul.f32 %v569, 0.70710677
      %vm574 = vcmp.lt.f32.partialorder %v572, 0.0
      %vm575 = vcmp.lt.f32.partialorder %v573, 0.0
      %v576 = vsel %vm574, -1.0, 1.0
      %v577 = vsel %vm575, -1.0, 1.0
      %v578 = vand.u32 2147483647, %v572
      %v579 = vand.u32 2147483647, %v573
      %v580 = vmul.f32 %v578, 0.3275911
      %v581 = vmul.f32 %v579, 0.3275911
      %v582 = vadd.f32 %v580, 1.0
      %v583 = vadd.f32 %v581, 1.0
      %v584 = vrcp.pop %v582
      %v585 = vmul.f32 %v582, %v584
      %v586 = vsub.f32 1.0, %v585
      %v587 = vmul.f32 %v584, %v586
      %v588 = vadd.f32 %v584, %v587
      %vm589 = vweird.f32 %v582
      %vm590 = vweird.f32 %v584
      %vm591 = vmor %vm589, %vm590
      %v592 = vsel %vm591, %v584, %v588
      %v593 = vand.u32 2147483647, %v582
      %vm594 = vcmp.eq.f32.partialorder %v593, 8.507059e+37
      %v595 = vand.u32 %v582, 2147483648
      %v596 = vor.u32 1.1754944e-38, %v595
      %v597 = vsel %vm594, %v596, %v592
      %v598 = vmul.f32 1.0, %v597
      %v599 = vrcp.pop %v583
      %v600 = vmul.f32 %v583, %v599
      %v601 = vsub.f32 1.0, %v600
      %v602 = vmul.f32 %v599, %v601
      %v603 = vadd.f32 %v599, %v602
      %vm604 = vweird.f32 %v583
      %vm605 = vweird.f32 %v599
      %vm606 = vmor %vm604, %vm605
      %v607 = vsel %vm606, %v599, %v603
      %v608 = vand.u32 2147483647, %v583
      %vm609 = vcmp.eq.f32.partialorder %v608, 8.507059e+37
      %v610 = vand.u32 %v583, 2147483648
      %v611 = vor.u32 1.1754944e-38, %v610
      %v612 = vsel %vm609, %v611, %v607
      %v613 = vmul.f32 1.0, %v612
      %v614 = vmul.f32 %v598, 1.0614054
      %v615 = vmul.f32 %v613, 1.0614054
      %v616 = vadd.f32 %v614, -1.4531521
      %v617 = vadd.f32 %v615, -1.4531521
      %v618 = vmul.f32 %v616, %v598
      %v619 = vmul.f32 %v617, %v613
      %v620 = vadd.f32 %v618, 1.4214138
      %v621 = vadd.f32 %v619, 1.4214138
      %v622 = vmul.f32 %v620, %v598
      %v623 = vmul.f32 %v621, %v613
      %v624 = vadd.f32 %v622, -0.28449672
      %v625 = vadd.f32 %v623, -0.28449672
      %v626 = vmul.f32 %v624, %v598
      %v627 = vmul.f32 %v625, %v613
      %v628 = vadd.f32 %v626, 0.2548296
      %v629 = vadd.f32 %v627, 0.2548296
      %v630 = vmul.f32 %v628, %v598
      %v631 = vmul.f32 %v629, %v613
      %v632 = vsub.f32 0.0, %v578
      %v633 = vsub.f32 0.0, %v579
      %v634 = vmul.f32 %v632, %v578
      %v635 = vmul.f32 %v633, %v579
      %v636 = vmul.f32 %v634, 1.442695
      %v637 = vpow.pop %v636
      %v638 = vmul.f32 %v635, 1.442695
      %v639 = vpow.pop %v638
      %v640 = vmul.f32 %v630, %v637
      %v641 = vmul.f32 %v631, %v639
      %v642 = vsub.f32 1.0, %v640
      %v643 = vsub.f32 1.0, %v641
      %v644 = vmul.f32 %v576, %v642
      %v645 = vmul.f32 %v577, %v643
      %v646 = vadd.f32 %v644, 1.0
      %v647 = vadd.f32 %v645, 1.0
      %v648 = vmul.f32 %v570, %v646
      %v649 = vmul.f32 %v571, %v647
      %650 = vst [vmem:[#allocation1] ss:$2 sm:$0xff] %v327
      %v651 = vld.sshfl [vmem:[#allocation1] sm:$0xff pattern:$0x75316420]
      %v652 = vld.sshfl [vmem:[#allocation1 + $0x8] sm:$0xff pattern:$0x75316420]
      %v653 = vsel %vm337, %v651, 0
      %v655 = vsel %vm337, %v652, 0
      %657 = vmatpush.msra.mxu0 0.0
      %658 = vmatpush.msra.mxu0 0.0
      %659 = vmatpush.msra.mxu0 0.0
      %660 = vmatpush.msra.mxu0 0.0
      %661 = vmatpush.msra.mxu0 0.0
      %662 = vmatpush.msra.mxu0 0.0
      %663 = vmatpush.msra.mxu0 0.0
      %664 = vmatpush.msra.mxu0 0.0
      %665 = vmatpush.msra.mxu0 0.0
      %666 = vmatpush.msra.mxu0 0.0
      %667 = vmatpush.msra.mxu0 0.0
      %668 = vmatpush.msra.mxu0 0.0
      %669 = vmatpush.msra.mxu0 0.0
      %670 = vmatpush.msra.mxu0 0.0
      %671 = vmatpush.msra.mxu0 0.0
      %672 = vmatpush.msra.mxu0 %v653
      %673 = vmatmul.f32.gmra.mxu0 %v335
      %v674 = vpop.f32.mrf.mxu0
      %v675 = vadd.f32 0.0, %v674
      %676 = vdwg.mxu0
      %677 = vmatpush.msra.mxu0 0.0
      %678 = vmatpush.msra.mxu0 0.0
      %679 = vmatpush.msra.mxu0 0.0
      %680 = vmatpush.msra.mxu0 0.0
      %681 = vmatpush.msra.mxu0 0.0
      %682 = vmatpush.msra.mxu0 0.0
      %683 = vmatpush.msra.mxu0 0.0
      %684 = vmatpush.msra.mxu0 0.0
      %685 = vmatpush.msra.mxu0 0.0
      %686 = vmatpush.msra.mxu0 0.0
      %687 = vmatpush.msra.mxu0 0.0
      %688 = vmatpush.msra.mxu0 0.0
      %689 = vmatpush.msra.mxu0 0.0
      %690 = vmatpush.msra.mxu0 0.0
      %691 = vmatpush.msra.mxu0 0.0
      %692 = vmatpush.msra.mxu0 %v655
      %693 = vmatmul.f32.gmra.mxu0 %v335
      %v694 = vpop.f32.mrf.mxu0
      %v695 = vadd.f32 0.0, %v694
      %696 = vdwg.mxu0
      %v697 = vadd.f32 %v544, %v675
      %v698 = vadd.f32 %v564, %v695
      %v699 = vadd.f32 %v697, %v436
      %v700 = vadd.f32 %v698, %v436
      %v701 = vmul.f32 %v699, 0.5
      %v702 = vmul.f32 %v700, 0.5
      %v703 = vmul.f32 %v699, 0.70710677
      %v704 = vmul.f32 %v700, 0.70710677
      %vm705 = vcmp.lt.f32.partialorder %v703, 0.0
      %vm706 = vcmp.lt.f32.partialorder %v704, 0.0
      %v707 = vsel %vm705, -1.0, 1.0
      %v708 = vsel %vm706, -1.0, 1.0
      %v709 = vand.u32 2147483647, %v703
      %v710 = vand.u32 2147483647, %v704
      %v711 = vmul.f32 %v709, 0.3275911
      %v712 = vmul.f32 %v710, 0.3275911
      %v713 = vadd.f32 %v711, 1.0
      %v714 = vadd.f32 %v712, 1.0
      %v715 = vrcp.pop %v713
      %v716 = vmul.f32 %v713, %v715
      %v717 = vsub.f32 1.0, %v716
      %v718 = vmul.f32 %v715, %v717
      %v719 = vadd.f32 %v715, %v718
      %vm720 = vweird.f32 %v713
      %vm721 = vweird.f32 %v715
      %vm722 = vmor %vm720, %vm721
      %v723 = vsel %vm722, %v715, %v719
      %v724 = vand.u32 2147483647, %v713
      %vm725 = vcmp.eq.f32.partialorder %v724, 8.507059e+37
      %v726 = vand.u32 %v713, 2147483648
      %v727 = vor.u32 1.1754944e-38, %v726
      %v728 = vsel %vm725, %v727, %v723
      %v729 = vmul.f32 1.0, %v728
      %v730 = vrcp.pop %v714
      %v731 = vmul.f32 %v714, %v730
      %v732 = vsub.f32 1.0, %v731
      %v733 = vmul.f32 %v730, %v732
      %v734 = vadd.f32 %v730, %v733
      %vm735 = vweird.f32 %v714
      %vm736 = vweird.f32 %v730
      %vm737 = vmor %vm735, %vm736
      %v738 = vsel %vm737, %v730, %v734
      %v739 = vand.u32 2147483647, %v714
      %vm740 = vcmp.eq.f32.partialorder %v739, 8.507059e+37
      %v741 = vand.u32 %v714, 2147483648
      %v742 = vor.u32 1.1754944e-38, %v741
      %v743 = vsel %vm740, %v742, %v738
      %v744 = vmul.f32 1.0, %v743
      %v745 = vmul.f32 %v729, 1.0614054
      %v746 = vmul.f32 %v744, 1.0614054
      %v747 = vadd.f32 %v745, -1.4531521
      %v748 = vadd.f32 %v746, -1.4531521
      %v749 = vmul.f32 %v747, %v729
      %v750 = vmul.f32 %v748, %v744
      %v751 = vadd.f32 %v749, 1.4214138
      %v752 = vadd.f32 %v750, 1.4214138
      %v753 = vmul.f32 %v751, %v729
      %v754 = vmul.f32 %v752, %v744
      %v755 = vadd.f32 %v753, -0.28449672
      %v756 = vadd.f32 %v754, -0.28449672
      %v757 = vmul.f32 %v755, %v729
      %v758 = vmul.f32 %v756, %v744
      %v759 = vadd.f32 %v757, 0.2548296
      %v760 = vadd.f32 %v758, 0.2548296
      %v761 = vmul.f32 %v759, %v729
      %v762 = vmul.f32 %v760, %v744
      %v763 = vsub.f32 0.0, %v709
      %v764 = vsub.f32 0.0, %v710
      %v765 = vmul.f32 %v763, %v709
      %v766 = vmul.f32 %v764, %v710
      %v767 = vmul.f32 %v765, 1.442695
      %v768 = vpow.pop %v767
      %v769 = vmul.f32 %v766, 1.442695
      %v770 = vpow.pop %v769
      %v771 = vmul.f32 %v761, %v768
      %v772 = vmul.f32 %v762, %v770
      %v773 = vsub.f32 1.0, %v771
      %v774 = vsub.f32 1.0, %v772
      %v775 = vmul.f32 %v707, %v773
      %v776 = vmul.f32 %v708, %v774
      %v777 = vadd.f32 %v775, 1.0
      %v778 = vadd.f32 %v776, 1.0
      %v779 = vmul.f32 %v701, %v777
      %v780 = vmul.f32 %v702, %v778
      %v781 = vrot.slane %v519, 4
      %v782 = vsel %vm337, %v518, %v781
      %784 = vst [vmem:[%s323] sm:$0xff] %v782
      %v787 = vrot.slane %v649, 4
      %v788 = vsel %vm337, %v648, %v787
      %790 = vst [vmem:[%s318] sm:$0xff] %v788
      %v793 = vrot.slane %v780, 4
      %v794 = vsel %vm337, %v779, %v793
      %796 = vst [vmem:[%s313] sm:$0xff] %v794
      %p797 = scmp.lt.s32.totalorder %s19, 1
      %s798 = scalar_select %p797, %s19, 1
      %s799 = smul.addr %s798, 2
      %s800 = smul.addr %s799, 4
      %s801 = scalar_lea.vmem %s5, %s800
      %p802 = scmp.lt.s32.totalorder %s19, 1
      %s803 = scalar_select %p802, %s19, 1
      %s804 = smul.addr %s803, 2
      %s805 = smul.addr %s804, 4
      %s806 = scalar_lea.vmem %s6, %s805
      %p807 = scmp.lt.s32.totalorder %s19, 1
      %s808 = scalar_select %p807, %s19, 1
      %s809 = smul.addr %s808, 2
      %s810 = smul.addr %s809, 4
      %s811 = scalar_lea.vmem %s7, %s810
      // Predicated region
      $region41: #{fifb_forward.1} parent=39 // pred_check
        %p812 = pneg %p152
      $region42: #{fifb_forward.1} parent=39 // pred_check_branch
        %814 = sbr.rel (%p812) target = $region44
      $region43: #{fifb_forward.1} parent=39 // pred_region
        _
      $region44: #{fifb_forward.1} parent=39 // pred_fallthru
        _
      // Predicated region
      $region45: #{fifb_forward.1} parent=39 // pred_check
        %p815 = pneg %p178
      $region46: #{fifb_forward.1} parent=39 // pred_check_branch
        %817 = sbr.rel (%p815) target = $region48
      $region47: #{fifb_forward.1} parent=39 // pred_region
        _
      $region48: #{fifb_forward.1} parent=39 // pred_fallthru
        _
      // Predicated region
      $region49: #{fifb_forward.1} parent=39 // pred_check
        %p818 = pneg %p204
      $region50: #{fifb_forward.1} parent=39 // pred_check_branch
        %820 = sbr.rel (%p818) target = $region52
      $region51: #{fifb_forward.1} parent=39 // pred_region
        _
      $region52: #{fifb_forward.1} parent=39 // pred_fallthru
        _
    $region40: #{fifb_forward.1} parent=5 // pred_fallthru
      _
    %p821 = scmp.le.s32.totalorder 2, %s14
    // Predicated region
    $region53: #{fifb_forward.1} parent=5 // pred_check
      %p822 = pneg %p821
    $region54: #{fifb_forward.1} parent=5 // pred_check_branch
      %824 = sbr.rel (%p822) target = $region56
    $region55: #{fifb_forward.1} parent=5 // pred_region
      %s825 = ssub.s32 %s14, 2
      // Predicated region
      $region57: #{fifb_forward.1} parent=55 // pred_check
        %p826 = pneg %p158
      $region58: #{fifb_forward.1} parent=55 // pred_check_branch
        %828 = sbr.rel (%p826) target = $region60
      $region59: #{fifb_forward.1} parent=55 // pred_region
        %p829 = scmp.lt.s32.totalorder %s20, 1
        %s830 = scalar_select %p829, %s20, 1
        %s831 = smul.addr %s830, 2
        %s832 = smul.addr %s831, 4
        %s833 = scalar_lea.vmem %s5, %s832
      $region60: #{fifb_forward.1} parent=55 // pred_fallthru
        _
      // Predicated region
      $region61: #{fifb_forward.1} parent=55 // pred_check
        %p834 = pneg %p184
      $region62: #{fifb_forward.1} parent=55 // pred_check_branch
        %836 = sbr.rel (%p834) target = $region64
      $region63: #{fifb_forward.1} parent=55 // pred_region
        %p837 = scmp.lt.s32.totalorder %s20, 1
        %s838 = scalar_select %p837, %s20, 1
        %s839 = smul.addr %s838, 2
        %s840 = smul.addr %s839, 4
        %s841 = scalar_lea.vmem %s6, %s840
      $region64: #{fifb_forward.1} parent=55 // pred_fallthru
        _
      // Predicated region
      $region65: #{fifb_forward.1} parent=55 // pred_check
        %p842 = pneg %p210
      $region66: #{fifb_forward.1} parent=55 // pred_check_branch
        %844 = sbr.rel (%p842) target = $region68
      $region67: #{fifb_forward.1} parent=55 // pred_region
        %p845 = scmp.lt.s32.totalorder %s20, 1
        %s846 = scalar_select %p845, %s20, 1
        %s847 = smul.addr %s846, 2
        %s848 = smul.addr %s847, 4
        %s849 = scalar_lea.vmem %s7, %s848
      $region68: #{fifb_forward.1} parent=55 // pred_fallthru
        _
    $region56: #{fifb_forward.1} parent=5 // pred_fallthru
      _
  $region6: #{fifb_forward.1} parent=0 // loop_footer
    %s18 = sadd.s32 1, %s14
  $region7: #{fifb_forward.1} parent=0 // loop_footer_branch
    %13 = sbr.rel target = $region3
  $region8: #{fifb_forward.1} parent=0 // loop_exit
    _

</llo_original>
